<compile_context>
chip_gen: v5e
topology: v5e:2x2
jax: 0.10.0
libtpu: 0.0.40
codegen_flags: <defaults>
</compile_context>

<pallas_src>
import jax
import jax.numpy as jnp
from jax.experimental import pallas as pl
from jax.experimental.pallas import tpu as pltpu


# ----------------------------- Pallas kernel ------------------------------- #
def din_kernel(qd_ref, k_ref, mask_ref, w_ref, scal_ref, out_ref):
    Bt, L, E = k_ref.shape
    H = w_ref.shape[1]
    a0 = ((3 * E + 1 + 7) // 8) * 8          # 8-row-aligned start of w_a section

    qd = qd_ref[...]                          # (Bt, E+1): item embedding | dense
    q = qd[:, 0:E]                            # (Bt, E)
    dense = qd[:, E]                          # (Bt,)
    k3 = k_ref[...]                           # (Bt, L, E)  history embedding (k == v)

    # --- fused attention MLP: ONE MXU pass, bias folded into the K dim -----
    # lhs = [q, k, q*k, 1]  (the q-k block is algebraically folded into w_q/w_k)
    qb = jnp.broadcast_to(q[:, None, :], (Bt, L, E))
    ones = jnp.ones((Bt, L, 1), dtype=k3.dtype)
    lhs = jnp.concatenate([qb, k3, qb * k3, ones], axis=-1).reshape(Bt * L, 3 * E + 1)
    h = jax.nn.sigmoid(
        jnp.dot(lhs, w_ref[0:3 * E + 1, :], preferred_element_type=jnp.float32)
    ).reshape(Bt, L, H)                       # (Bt, L, H) f32

    # --- attention score: VPU multiply + lane reduce (final bias cancels) ---
    w_a = w_ref[a0, :]                        # (H,) attention final-linear weight
    s = jnp.sum(h * w_a[None, None, :], axis=-1)          # (Bt, L), L lane-dense
    s = s + mask_ref[...]                                  # additive 0 / -1e30

    # --- masked softmax over history (2-D, lane axis = L) -------------------
    m = jnp.max(s, axis=1, keepdims=True)
    e = jnp.exp(s - m)
    p = e / jnp.sum(e, axis=1, keepdims=True)              # exact normalize

    # --- folded BN(eval) + DNN + final linear --------------------------------
    # attn . w_attn  ==  sum_l p_l * (k_l . w_attn)  -> stays (Bt, L) 2-D
    w_attn = w_ref[a0 + 8, :][0:E]                         # (E,)
    kw = jnp.sum(k3 * w_attn[None, None, :], axis=-1)      # (Bt, L)
    o = jnp.sum(p * kw, axis=1) + dense * scal_ref[0] + scal_ref[1]   # (Bt,)

    out_ref[...] = jax.nn.sigmoid(o).reshape(1, Bt)        # lane-dense store


# ------------------------------- wrapper ----------------------------------- #
def _pack_params(params):
    """Fuse the activation-free linear chains (eval mode) and pack them into
    one small weight slab (+ 2 SMEM scalars) for a single parameter DMA."""
    E = params["behavior_emb"].shape[1]
    H = params["att_w2"].shape[1]
    assert E <= H

    # Attention MLP: two linears with no nonlinearity between -> one matmul,
    # rows split so the [q, k, q-k, q*k] concat collapses to [q, k, q*k, 1].
    w12 = params["att_w1"] @ params["att_w2"]                        # (4E, H)
    b12 = params["att_b1"] @ params["att_w2"] + params["att_b2"]     # (1, H)
    w_q = w12[0:E] + w12[2 * E:3 * E]
    w_k = w12[E:2 * E] - w12[2 * E:3 * E]
    w_p = w12[3 * E:4 * E]
    fused = jnp.concatenate([w_q, w_k, w_p, b12], axis=0)            # (3E+1, H)
    w_a = params["att_wf"].reshape(1, H)                             # (1, H)
    # att_bf is constant along the softmax axis -> cancels, dropped.

    # BatchNorm(eval) + dnn_w1 + dnn_w2 + final_w -> single (1+E, 1) affine.
    scale = params["bn_gamma"] / jnp.sqrt(params["bn_var"] + 1e-5)   # (1, 1+E)
    shift = params["bn_beta"] - params["bn_mean"] * scale
    w_chain = params["dnn_w1"] @ params["dnn_w2"] @ params["final_w"]   # (1+E, 1)
    w_post = scale.reshape(-1, 1) * w_chain                             # (1+E, 1)
    b_post = (shift @ w_chain
              + params["dnn_b1"] @ params["dnn_w2"] @ params["final_w"]
              + params["dnn_b2"] @ params["final_w"]
              + params["final_b"])                                      # (1, 1)

    # Slab layout (8-row aligned sections):
    #   rows [0, 3E+1)   : fused [w_q; w_k; w_p; b12]
    #   row  a0          : w_a
    #   row  a0 + 8      : w_attn (cols 0:E)
    a0 = ((3 * E + 1 + 7) // 8) * 8
    slab = jnp.zeros((a0 + 16, H), jnp.float32)
    slab = slab.at[0:3 * E + 1, :].set(fused)
    slab = slab.at[a0, :].set(w_a[0])
    slab = slab.at[a0 + 8, 0:E].set(w_post[1:, 0])
    scalars = jnp.stack([w_post[0, 0], b_post[0, 0]]).astype(jnp.float32)  # SMEM
    return slab, scalars


def din_forward(params, dense_inputs, hist_inputs, item_inputs, *,
                batch_tile=512, compute_dtype=jnp.float32):
    B, L = hist_inputs.shape
    E = params["behavior_emb"].shape[1]

    # Embedding gathers + parameter fusion are glue (plain JAX).
    hist_emb = params["behavior_emb"][hist_inputs]                   # (B, L, E)
    item_emb = params["behavior_emb"][item_inputs[:, 0]]             # (B, E)
    qd = jnp.concatenate(
        [item_emb, dense_inputs.astype(jnp.float32).reshape(B, 1)], axis=-1)  # (B, E+1)
    mask_add = jnp.where(hist_inputs == 0, -1e30, 0.0).astype(jnp.float32)    # (B, L)
    slab, scalars = _pack_params(params)

    # Optional bf16 elementwise/embedding path for v6e/v7x (f32 MXU accumulate,
    # f32 softmax).  Keep f32 on v5e (no bf16 VPU/EUP).
    if compute_dtype != jnp.float32:
        qd = qd.astype(compute_dtype)
        hist_emb = hist_emb.astype(compute_dtype)
        slab = slab.astype(compute_dtype)

    # Large batch tiles: per-step footprint is tiny, so use one tile per 512
    # rows.  Lane-dense output tiles must be 128-aligned unless the whole
    # batch fits a single tile.  Ragged batches are zero-padded (zero mask ->
    # unmasked -> finite garbage in the padded rows, sliced off below).
    if B <= batch_tile:
        bt, Bp = B, B
    else:
        assert batch_tile % 128 == 0, \
            "batch_tile must be a multiple of 128 (lane-dense output tiling)"
        bt = batch_tile
        Bp = ((B + bt - 1) // bt) * bt
    if Bp != B:
        pad = Bp - B
        qd = jnp.pad(qd, ((0, pad), (0, 0)))
        hist_emb = jnp.pad(hist_emb, ((0, pad), (0, 0), (0, 0)))
        mask_add = jnp.pad(mask_add, ((0, pad), (0, 0)))

    grid = (Bp // bt,)
    out = pl.pallas_call(
        din_kernel,
        out_shape=jax.ShapeDtypeStruct((1, Bp), jnp.float32),
        grid=grid,
        in_specs=[
            pl.BlockSpec((bt, E + 1), lambda i: (i, 0)),          # item emb | dense
            pl.BlockSpec((bt, L, E), lambda i: (i, 0, 0)),        # hist emb (k == v)
            pl.BlockSpec((bt, L), lambda i: (i, 0)),              # additive mask
            pl.BlockSpec(slab.shape, lambda i: (0, 0)),           # packed params (resident)
            pl.BlockSpec(memory_space=pltpu.MemorySpace.SMEM),    # [w_dense, b_post]
        ],
        out_specs=pl.BlockSpec((1, bt), lambda i: (0, i)),        # lane-dense output
        compiler_params=pltpu.CompilerParams(
            dimension_semantics=("parallel",)),
    )(qd, hist_emb, mask_add, slab, scalars)
    return out.reshape(Bp, 1)[:B]


# ------------------------- pure-JAX reference ------------------------------ #
def din_reference(params, dense, hist, item):
    k = params["behavior_emb"][hist]
    q = jnp.broadcast_to(params["behavior_emb"][item[:, 0]][:, None, :], k.shape)
    info = jnp.concatenate([q, k, q - k, q * k], axis=-1)
    info = info @ params["att_w1"] + params["att_b1"]
    info = info @ params["att_w2"] + params["att_b2"]
    info = jax.nn.sigmoid(info)
    s = info @ params["att_wf"] + params["att_bf"]                   # (B, L, 1)
    mask = (hist == 0)[:, :, None]
    s = jnp.where(mask, -jnp.inf, s)
    p = jax.nn.softmax(s, axis=1)
    attn = jnp.sum(p * k, axis=1)
    feat = jnp.concatenate([dense, attn], axis=-1)
    bn = ((feat - params["bn_mean"]) / jnp.sqrt(params["bn_var"] + 1e-5)
          * params["bn_gamma"] + params["bn_beta"])
    d = bn @ params["dnn_w1"] + params["dnn_b1"]
    d = d @ params["dnn_w2"] + params["dnn_b2"]
    o = d @ params["final_w"] + params["final_b"]
    return jax.nn.sigmoid(o)


# --------------------------- parameter init -------------------------------- #
def init_params(key, *, embed_dim=8, behavior_vocab=50,
                att_hidden=(32, 80, 40), ffn_hidden=(9, 80, 40)):
    assert att_hidden[0] == 4 * embed_dim
    assert ffn_hidden[0] == 1 + embed_dim
    keys = jax.random.split(key, 10)

    def lin(k, fan_in, fan_out):
        kw, kb = jax.random.split(k)
        w = jax.random.normal(kw, (fan_in, fan_out), jnp.float32) * 0.1
        b = jax.random.normal(kb, (1, fan_out), jnp.float32) * 0.05
        return w, b

    p = {}
    p["behavior_emb"] = jax.random.normal(keys[0], (behavior_vocab, embed_dim), jnp.float32) * 0.1
    p["att_w1"], p["att_b1"] = lin(keys[1], att_hidden[0], att_hidden[1])
    p["att_w2"], p["att_b2"] = lin(keys[2], att_hidden[1], att_hidden[2])
    p["att_wf"], p["att_bf"] = lin(keys[3], att_hidden[2], 1)
    n_bn = ffn_hidden[0]
    p["bn_gamma"] = 1.0 + 0.1 * jax.random.normal(keys[4], (1, n_bn), jnp.float32)
    p["bn_beta"] = 0.05 * jax.random.normal(keys[5], (1, n_bn), jnp.float32)
    p["bn_mean"] = jnp.zeros((1, n_bn), jnp.float32)
    p["bn_var"] = jnp.ones((1, n_bn), jnp.float32)
    p["dnn_w1"], p["dnn_b1"] = lin(keys[6], ffn_hidden[0], ffn_hidden[1])
    p["dnn_w2"], p["dnn_b2"] = lin(keys[7], ffn_hidden[1], ffn_hidden[2])
    p["final_w"], p["final_b"] = lin(keys[8], ffn_hidden[2], 1)
    return p


if __name__ == "__main__":
    key = jax.random.PRNGKey(0)
    kp, kd, kh, ki = jax.random.split(key, 4)

    B, L, E = 8, 8, 8          # batch, history maxlen, embedding dim
    params = init_params(kp, embed_dim=E)

    dense_inputs = jax.random.normal(kd, (B, 1), jnp.float32)
    hist_inputs = jax.random.randint(kh, (B, L), 0, 50)
    # guarantee at least one unmasked history item per row (torch would NaN otherwise)
    hist_inputs = hist_inputs.at[:, 0].set(jnp.maximum(hist_inputs[:, 0], 1))
    item_inputs = jax.random.randint(ki, (B, 1), 1, 50)

    out = jax.block_until_ready(din_forward(params, dense_inputs, hist_inputs, item_inputs))
    ref = din_reference(params, dense_inputs, hist_inputs, item_inputs)
    assert out.shape == (B, 1)
    assert bool(jnp.all(jnp.isfinite(out)))
    assert jnp.allclose(out, ref, atol=2e-2, rtol=2e-2)

    # Exercise the multi-tile (grid > 1) path with lane-dense 128-wide output tiles.
    B2 = 256
    kd2, kh2, ki2 = jax.random.split(jax.random.PRNGKey(1), 3)
    dense2 = jax.random.normal(kd2, (B2, 1), jnp.float32)
    hist2 = jax.random.randint(kh2, (B2, L), 0, 50)
    hist2 = hist2.at[:, 0].set(jnp.maximum(hist2[:, 0], 1))
    item2 = jax.random.randint(ki2, (B2, 1), 1, 50)
    out2 = jax.block_until_ready(
        din_forward(params, dense2, hist2, item2, batch_tile=128))
    ref2 = din_reference(params, dense2, hist2, item2)
    assert out2.shape == (B2, 1)
    assert bool(jnp.all(jnp.isfinite(out2)))
    assert jnp.allclose(out2, ref2, atol=2e-2, rtol=2e-2)

    print("KERNEL_OK")
</pallas_src>

<mosaic_0001>
module attributes {stable_mosaic.version = 11 : i64} {
  func.func @din_kernel(%arg0: i32, %arg1: memref<8x9xf32, #tpu.memory_space<vmem>>, %arg2: memref<8x8x8xf32, #tpu.memory_space<vmem>>, %arg3: memref<8x8xf32, #tpu.memory_space<vmem>>, %arg4: memref<48x40xf32, #tpu.memory_space<vmem>>, %arg5: memref<2xf32, #tpu.memory_space<smem>>, %arg6: memref<1x8xf32, #tpu.memory_space<vmem>>) attributes {dimension_semantics = [#tpu.dimension_semantics<parallel>], iteration_bounds = array<i64: 1>, scalar_prefetch = 0 : i64, scratch_operands = 0 : i64, tpu.core_type = #tpu.core_type<tc>, window_params = [{transform_indices = @transform_0, window_bounds = array<i64: 8, 9>}, {transform_indices = @transform_1, window_bounds = array<i64: 8, 8, 8>}, {transform_indices = @transform_2, window_bounds = array<i64: 8, 8>}, {pipeline_mode = #tpu.pipeline_mode<synchronous>, transform_indices = @transform_3, window_bounds = array<i64: 48, 40>}, {transform_indices = @transform_4, window_bounds = array<i64: 2>}, {transform_indices = @transform_5, window_bounds = array<i64: 1, 8>}]} {
    %c0 = arith.constant 0 : index
    %c0_0 = arith.constant 0 : index
    %0 = vector.load %arg1[%c0, %c0_0] : memref<8x9xf32, #tpu.memory_space<vmem>>, vector<8x9xf32>
    %1 = vector.extract_strided_slice %0 {offsets = [0, 0], sizes = [8, 8], strides = [1, 1]} : vector<8x9xf32> to vector<8x8xf32>
    %2 = vector.extract_strided_slice %0 {offsets = [0, 8], sizes = [8, 1], strides = [1, 1]} : vector<8x9xf32> to vector<8x1xf32>
    %3 = vector.shape_cast %2 : vector<8x1xf32> to vector<8xf32>
    %c0_1 = arith.constant 0 : index
    %c0_2 = arith.constant 0 : index
    %c0_3 = arith.constant 0 : index
    %4 = vector.load %arg2[%c0_1, %c0_2, %c0_3] : memref<8x8x8xf32, #tpu.memory_space<vmem>>, vector<8x8x8xf32>
    %5 = vector.shape_cast %1 : vector<8x8xf32> to vector<8x1x8xf32>
    %6 = vector.shape_cast %5 : vector<8x1x8xf32> to vector<8x1x8xf32>
    %7 = vector.broadcast %6 : vector<8x1x8xf32> to vector<8x8x8xf32>
    %cst = arith.constant 1.000000e+00 : f32
    %8 = vector.broadcast %cst : f32 to vector<8x8x1xf32>
    %9 = arith.mulf %7, %4 : vector<8x8x8xf32>
    %10 = tpu.concatenate %7, %4, %9, %8 in 2 : vector<8x8x8xf32>, vector<8x8x8xf32>, vector<8x8x8xf32>, vector<8x8x1xf32> -> vector<8x8x25xf32>
    %11 = vector.shape_cast %10 : vector<8x8x25xf32> to vector<64x25xf32>
    %c0_4 = arith.constant 0 : index
    %c0_5 = arith.constant 0 : index
    %12 = vector.load %arg4[%c0_4, %c0_5] : memref<48x40xf32, #tpu.memory_space<vmem>>, vector<25x40xf32>
    %cst_6 = arith.constant dense<0.000000e+00> : vector<64x40xf32>
    %13 = tpu.matmul %11, %12, %cst_6 {dimension_numbers = #tpu.dot_dimension_numbers<[1], [0], [0], [1], [0, 0, 1, 1], [], []>} : vector<64x25xf32>, vector<25x40xf32>, vector<64x40xf32> -> vector<64x40xf32>
    %14 = arith.negf %13 : vector<64x40xf32>
    %15 = math.exp %14 : vector<64x40xf32>
    %cst_7 = arith.constant 1.000000e+00 : f32
    %16 = vector.broadcast %cst_7 : f32 to vector<64x40xf32>
    %17 = arith.addf %16, %15 : vector<64x40xf32>
    %18 = arith.divf %16, %17 : vector<64x40xf32>
    %19 = vector.shape_cast %18 : vector<64x40xf32> to vector<8x8x40xf32>
    %c32 = arith.constant 32 : index
    %c0_8 = arith.constant 0 : index
    %20 = vector.load %arg4[%c32, %c0_8] : memref<48x40xf32, #tpu.memory_space<vmem>>, vector<1x40xf32>
    %21 = vector.shape_cast %20 : vector<1x40xf32> to vector<40xf32>
    %22 = vector.shape_cast %21 : vector<40xf32> to vector<1x1x40xf32>
    %23 = vector.broadcast %22 : vector<1x1x40xf32> to vector<8x8x40xf32>
    %24 = arith.mulf %19, %23 : vector<8x8x40xf32>
    %cst_9 = arith.constant dense<0.000000e+00> : vector<8x8xf32>
    %25 = vector.multi_reduction <add>, %24, %cst_9 [2] : vector<8x8x40xf32> to vector<8x8xf32>
    %c0_10 = arith.constant 0 : index
    %c0_11 = arith.constant 0 : index
    %26 = vector.load %arg3[%c0_10, %c0_11] : memref<8x8xf32, #tpu.memory_space<vmem>>, vector<8x8xf32>
    %27 = arith.addf %25, %26 : vector<8x8xf32>
    %cst_12 = arith.constant dense<0xFF800000> : vector<8xf32>
    %28 = vector.multi_reduction <maximumf>, %27, %cst_12 [1] : vector<8x8xf32> to vector<8xf32>
    %29 = vector.shape_cast %28 : vector<8xf32> to vector<8x1xf32>
    %30 = vector.broadcast %29 : vector<8x1xf32> to vector<8x8xf32>
    %31 = arith.subf %27, %30 : vector<8x8xf32>
    %32 = math.exp %31 : vector<8x8xf32>
    %cst_13 = arith.constant dense<0.000000e+00> : vector<8xf32>
    %33 = vector.multi_reduction <add>, %32, %cst_13 [1] : vector<8x8xf32> to vector<8xf32>
    %34 = vector.shape_cast %33 : vector<8xf32> to vector<8x1xf32>
    %35 = vector.broadcast %34 : vector<8x1xf32> to vector<8x8xf32>
    %36 = arith.divf %32, %35 : vector<8x8xf32>
    %c40 = arith.constant 40 : index
    %c0_14 = arith.constant 0 : index
    %37 = vector.load %arg4[%c40, %c0_14] : memref<48x40xf32, #tpu.memory_space<vmem>>, vector<1x40xf32>
    %38 = vector.shape_cast %37 : vector<1x40xf32> to vector<40xf32>
    %39 = vector.extract_strided_slice %38 {offsets = [0], sizes = [8], strides = [1]} : vector<40xf32> to vector<8xf32>
    %40 = vector.shape_cast %39 : vector<8xf32> to vector<1x1x8xf32>
    %41 = vector.broadcast %40 : vector<1x1x8xf32> to vector<8x8x8xf32>
    %42 = arith.mulf %4, %41 : vector<8x8x8xf32>
    %cst_15 = arith.constant dense<0.000000e+00> : vector<8x8xf32>
    %43 = vector.multi_reduction <add>, %42, %cst_15 [2] : vector<8x8x8xf32> to vector<8x8xf32>
    %44 = arith.mulf %36, %43 : vector<8x8xf32>
    %cst_16 = arith.constant dense<0.000000e+00> : vector<8xf32>
    %45 = vector.multi_reduction <add>, %44, %cst_16 [1] : vector<8x8xf32> to vector<8xf32>
    %c0_17 = arith.constant 0 : index
    %46 = memref.load %arg5[%c0_17] : memref<2xf32, #tpu.memory_space<smem>>
    %47 = vector.broadcast %46 : f32 to vector<8xf32>
    %48 = arith.mulf %3, %47 : vector<8xf32>
    %49 = arith.addf %45, %48 : vector<8xf32>
    %c1 = arith.constant 1 : index
    %50 = memref.load %arg5[%c1] : memref<2xf32, #tpu.memory_space<smem>>
    %51 = vector.broadcast %50 : f32 to vector<8xf32>
    %52 = arith.addf %49, %51 : vector<8xf32>
    %53 = arith.negf %52 : vector<8xf32>
    %54 = math.exp %53 : vector<8xf32>
    %cst_18 = arith.constant 1.000000e+00 : f32
    %55 = vector.broadcast %cst_18 : f32 to vector<8xf32>
    %56 = arith.addf %55, %54 : vector<8xf32>
    %57 = arith.divf %55, %56 : vector<8xf32>
    %58 = vector.shape_cast %57 : vector<8xf32> to vector<1x8xf32>
    %c0_19 = arith.constant 0 : index
    %c0_20 = arith.constant 0 : index
    %59 = vector.load %arg6[%c0_19, %c0_20] : memref<1x8xf32, #tpu.memory_space<vmem>>, vector<1x8xf32>
    tpu.vector_store %arg6[%c0_19, %c0_20], %58 {strides = array<i32>} : memref<1x8xf32, #tpu.memory_space<vmem>>, vector<1x8xf32>,
    return
  }
  func.func @transform_0(%arg0: i32) -> (i32, i32) {
    %c0_i32 = arith.constant 0 : i32
    %c0_i32_0 = arith.constant 0 : i32
    return %arg0, %c0_i32 : i32, i32
  }
  func.func @transform_1(%arg0: i32) -> (i32, i32, i32) {
    %c0_i32 = arith.constant 0 : i32
    %c0_i32_0 = arith.constant 0 : i32
    %c0_i32_1 = arith.constant 0 : i32
    return %arg0, %c0_i32, %c0_i32_0 : i32, i32, i32
  }
  func.func @transform_2(%arg0: i32) -> (i32, i32) {
    %c0_i32 = arith.constant 0 : i32
    %c0_i32_0 = arith.constant 0 : i32
    return %arg0, %c0_i32 : i32, i32
  }
  func.func @transform_3(%arg0: i32) -> (i32, i32) {
    %c0_i32 = arith.constant 0 : i32
    %c0_i32_0 = arith.constant 0 : i32
    %c0_i32_1 = arith.constant 0 : i32
    return %c0_i32, %c0_i32_0 : i32, i32
  }
  func.func @transform_4(%arg0: i32) -> i32 {
    %c0_i32 = arith.constant 0 : i32
    %c0_i32_0 = arith.constant 0 : i32
    return %c0_i32 : i32
  }
  func.func @transform_5(%arg0: i32) -> (i32, i32) {
    %c0_i32 = arith.constant 0 : i32
    %c0_i32_0 = arith.constant 0 : i32
    return %c0_i32, %arg0 : i32, i32
  }
}

</mosaic_0001>

<llo_original>
// kernel: tpu_custom_call.1
$region0: #{tpu_custom_call.1}
  #allocation0 [shape = 'u32[]', space=smem, size = 0x4, offset = 0x4, fixed_abs, tag = 'smem constant byte address 0x4 - core index']
  #allocation1 [shape = 'u32[72,128]{1,0:T(1,128)}', space=vmem, size = 0x9000, scoped, tag = 'internal scratch']
  %s0 = inlined_call_operand.vmem [shape: f32[8,9], index: 0, kind: input, shape index: {}]
  %s1 = inlined_call_operand.vmem [shape: f32[8,8,8], index: 1, kind: input, shape index: {}]
  %s2 = inlined_call_operand.vmem [shape: f32[8,8], index: 2, kind: input, shape index: {}]
  %s3 = inlined_call_operand.vmem [shape: f32[48,40], index: 3, kind: input, shape index: {}]
  %s4 = inlined_call_operand.vmem [shape: f32[2], index: 4, kind: input, shape index: {}]
  %s5 = inlined_call_operand.hbm [shape: f32[1,8], index: 5, kind: output, shape index: {}]
  %s6 = sld [smem:[#allocation0]]
  $region34: #{tpu_custom_call.1} parent=0
    _
  %s8 = ssub.s32 1, %s6
  %s9 = scalar_select 0, %s8, %s6
  $region1: #{tpu_custom_call.1} parent=0
    #allocation2 [shape = 'u8[512]{0}', space=smem, size = 0x200, scoped, tag = 'input window, operand 4, single buffered']
    #allocation3 [shape = 's32[1]{0}', space=sflag, size = 0x4, scoped, tag = 'scoped memory for tpu_custom_call.1']
    #allocation4 [shape = 's32[1]{0}', space=sflag, size = 0x4, scoped, tag = 'scoped memory for tpu_custom_call.1']
    #allocation5 [shape = 'u8[512]{0}', space=vmem, size = 0x400, scoped, tag = 'output window, operand 0, single buffered']
    %10 = vsyncpa [#allocation4], 0
    %11 = vsyncpa [#allocation3], 0
    // Predicated region
    $region2: #{tpu_custom_call.1} parent=1 // pred_check
      _
    $region3: #{tpu_custom_call.1} parent=1 // pred_check_branch
      %13 = sbr.rel (0) target = $region5
    $region4: #{tpu_custom_call.1} parent=1 // pred_region
      _
    $region5: #{tpu_custom_call.1} parent=1 // pred_fallthru
      _
    // Predicated region
    $region6: #{tpu_custom_call.1} parent=1 // pred_check
      _
    $region7: #{tpu_custom_call.1} parent=1 // pred_check_branch
      %15 = sbr.rel (0) target = $region9
    $region8: #{tpu_custom_call.1} parent=1 // pred_region
      _
    $region9: #{tpu_custom_call.1} parent=1 // pred_fallthru
      _
    // Predicated region
    $region10: #{tpu_custom_call.1} parent=1 // pred_check
      _
    $region11: #{tpu_custom_call.1} parent=1 // pred_check_branch
      %17 = sbr.rel (0) target = $region13
    $region12: #{tpu_custom_call.1} parent=1 // pred_region
      _
    $region13: #{tpu_custom_call.1} parent=1 // pred_fallthru
      _
    // Predicated region
    $region14: #{tpu_custom_call.1} parent=1 // pred_check
      _
    $region15: #{tpu_custom_call.1} parent=1 // pred_check_branch
      %19 = sbr.rel (0) target = $region17
    $region16: #{tpu_custom_call.1} parent=1 // pred_region
      _
    $region17: #{tpu_custom_call.1} parent=1 // pred_fallthru
      _
    // Predicated region
    $region18: #{tpu_custom_call.1} parent=1 // pred_check
      _
    $region19: #{tpu_custom_call.1} parent=1 // pred_check_branch
      %21 = sbr.rel (0) target = $region21
    $region20: #{tpu_custom_call.1} parent=1 // pred_region
      %23 = vsyncadd [#allocation4], 0
      %s25 = sshll.u32 %s4, 4
      %s26 = int_to_ptr.vmem [resolvable:$true] %s25
      %28 = dma.vmem_to_smem %s26, 16, [#allocation2], [#allocation4]
    $region21: #{tpu_custom_call.1} parent=1 // pred_fallthru
      _
    // Predicated region
    $region22: #{tpu_custom_call.1} parent=1 // pred_check
      _
    $region23: #{tpu_custom_call.1} parent=1 // pred_check_branch
      %30 = sbr.rel (0) target = $region25
    $region24: #{tpu_custom_call.1} parent=1 // pred_region
      %32 = dma.done [#allocation4], 16
    $region25: #{tpu_custom_call.1} parent=1 // pred_fallthru
      _
    %33 = sfence
    %v34 = vld [vmem:[%s0] sm:$0xff]
    %v35 = vld [vmem:[%s1] sm:$0xff]
    %v36 = vld [vmem:[%s1 + $0x8] sm:$0xff]
    %v37 = vld [vmem:[%s1 + $0x10] sm:$0xff]
    %v38 = vld [vmem:[%s1 + $0x18] sm:$0xff]
    %v39 = vld [vmem:[%s1 + $0x20] sm:$0xff]
    %v40 = vld [vmem:[%s1 + $0x28] sm:$0xff]
    %v41 = vld [vmem:[%s1 + $0x30] sm:$0xff]
    %v42 = vld [vmem:[%s1 + $0x38] sm:$0xff]
    %v44 = vrot.slane %v34, 1
    %v45 = vrot.slane %v34, 2
    %v46 = vrot.slane %v34, 3
    %v47 = vrot.slane %v34, 4
    %v48 = vrot.slane %v34, 5
    %v49 = vrot.slane %v34, 6
    %v50 = vrot.slane %v34, 7
    %v51 = vperm.slane %v34, 0
    %v52 = vperm.slane %v44, 0
    %v53 = vperm.slane %v45, 0
    %v54 = vperm.slane %v46, 0
    %v55 = vperm.slane %v47, 0
    %v56 = vperm.slane %v48, 0
    %v57 = vperm.slane %v49, 0
    %v58 = vperm.slane %v50, 0
    %v67 = vmul.f32 %v51, %v35
    %v68 = vmul.f32 %v52, %v36
    %v69 = vmul.f32 %v53, %v37
    %v70 = vmul.f32 %v54, %v38
    %v71 = vmul.f32 %v55, %v39
    %v72 = vmul.f32 %v56, %v40
    %v73 = vmul.f32 %v57, %v41
    %v74 = vmul.f32 %v58, %v42
    %83 = vrot.lane.b32.xlu0 %v35, 8
    %v84 = vpop.permute.xlu0 %83
    %85 = vrot.lane.b32.xlu0 %v36, 8
    %v86 = vpop.permute.xlu0 %85
    %87 = vrot.lane.b32.xlu0 %v37, 8
    %v88 = vpop.permute.xlu0 %87
    %89 = vrot.lane.b32.xlu0 %v38, 8
    %v90 = vpop.permute.xlu0 %89
    %91 = vrot.lane.b32.xlu0 %v39, 8
    %v92 = vpop.permute.xlu0 %91
    %93 = vrot.lane.b32.xlu0 %v40, 8
    %v94 = vpop.permute.xlu0 %93
    %95 = vrot.lane.b32.xlu0 %v41, 8
    %v96 = vpop.permute.xlu0 %95
    %97 = vrot.lane.b32.xlu0 %v42, 8
    %v98 = vpop.permute.xlu0 %97
    %115 = vrot.lane.b32.xlu0 %v67, 16
    %v116 = vpop.permute.xlu0 %115
    %117 = vrot.lane.b32.xlu0 %v68, 16
    %v118 = vpop.permute.xlu0 %117
    %119 = vrot.lane.b32.xlu0 %v69, 16
    %v120 = vpop.permute.xlu0 %119
    %121 = vrot.lane.b32.xlu0 %v70, 16
    %v122 = vpop.permute.xlu0 %121
    %123 = vrot.lane.b32.xlu0 %v71, 16
    %v124 = vpop.permute.xlu0 %123
    %125 = vrot.lane.b32.xlu0 %v72, 16
    %v126 = vpop.permute.xlu0 %125
    %127 = vrot.lane.b32.xlu0 %v73, 16
    %v128 = vpop.permute.xlu0 %127
    %129 = vrot.lane.b32.xlu0 %v74, 16
    %v130 = vpop.permute.xlu0 %129
    %vm139 = vcmask 64512
    %v140 = vsel %vm139, %v51, %v84
    %v141 = vsel %vm139, %v52, %v86
    %v142 = vsel %vm139, %v53, %v88
    %v143 = vsel %vm139, %v54, %v90
    %v144 = vsel %vm139, %v55, %v92
    %v145 = vsel %vm139, %v56, %v94
    %v146 = vsel %vm139, %v57, %v96
    %v147 = vsel %vm139, %v58, %v98
    %vm148 = vcmask 130048
    %v149 = vsel %vm148, %v140, %v116
    %v150 = vsel %vm148, %v141, %v118
    %v151 = vsel %vm148, %v142, %v120
    %v152 = vsel %vm148, %v143, %v122
    %v153 = vsel %vm148, %v144, %v124
    %v154 = vsel %vm148, %v145, %v126
    %v155 = vsel %vm148, %v146, %v128
    %v156 = vsel %vm148, %v147, %v130
    %vm157 = vcmask 195584
    %v158 = vsel %vm157, %v149, 1.0
    %v159 = vsel %vm157, %v150, 1.0
    %v160 = vsel %vm157, %v151, 1.0
    %v161 = vsel %vm157, %v152, 1.0
    %v162 = vsel %vm157, %v153, 1.0
    %v163 = vsel %vm157, %v154, 1.0
    %v164 = vsel %vm157, %v155, 1.0
    %v165 = vsel %vm157, %v156, 1.0
    %v166 = vld [vmem:[%s3] sm:$0xff]
    %v167 = vld [vmem:[%s3 + $0x8] sm:$0xff]
    %v168 = vld [vmem:[%s3 + $0x10] sm:$0xff]
    %v169 = vld [vmem:[%s3 + $0x18] sm:$0x1]
    %vm170 = vcmask 203776
    %v172 = vsel %vm170, %v158, 0
    %v175 = vsel %vm170, %v159, 0
    %v178 = vsel %vm170, %v160, 0
    %v181 = vsel %vm170, %v161, 0
    %v184 = vsel %vm170, %v162, 0
    %v187 = vsel %vm170, %v163, 0
    %v190 = vsel %vm170, %v164, 0
    %v193 = vsel %vm170, %v165, 0
    %vm195 = vcmask 1040384
    %v197 = vsel %vm195, %v169, 0
    %199 = vmatpush.msra.mxu0 0.0
    %200 = vmatpush.msra.mxu0 0.0
    %201 = vmatpush.msra.mxu0 0.0
    %202 = vmatpush.msra.mxu0 0.0
    %203 = vmatpush.msra.mxu0 0.0
    %204 = vmatpush.msra.mxu0 0.0
    %205 = vmatpush.msra.mxu0 0.0
    %206 = vmatpush.msra.mxu0 0.0
    %207 = vmatpush.msra.mxu0 0.0
    %208 = vmatpush.msra.mxu0 0.0
    %209 = vmatpush.msra.mxu0 0.0
    %210 = vmatpush.msra.mxu0 0.0
    %211 = vmatpush.msra.mxu0 %v197
    %212 = vmatpush.msra.mxu0 %v168
    %213 = vmatpush.msra.mxu0 %v167
    %214 = vmatpush.msra.mxu0 %v166
    %215 = vmatmul.f32.gmra.mxu0 %v172
    %v216 = vpop.f32.mrf.mxu0
    %v217 = vadd.f32 0.0, %v216
    %218 = vmatmul.f32.gmra.mxu0 %v175
    %v219 = vpop.f32.mrf.mxu0
    %v220 = vadd.f32 0.0, %v219
    %221 = vmatmul.f32.gmra.mxu0 %v178
    %v222 = vpop.f32.mrf.mxu0
    %v223 = vadd.f32 0.0, %v222
    %224 = vmatmul.f32.gmra.mxu0 %v181
    %v225 = vpop.f32.mrf.mxu0
    %v226 = vadd.f32 0.0, %v225
    %227 = vmatmul.f32.gmra.mxu0 %v184
    %v228 = vpop.f32.mrf.mxu0
    %v229 = vadd.f32 0.0, %v228
    %230 = vmatmul.f32.gmra.mxu0 %v187
    %v231 = vpop.f32.mrf.mxu0
    %v232 = vadd.f32 0.0, %v231
    %233 = vmatmul.f32.gmra.mxu0 %v190
    %v234 = vpop.f32.mrf.mxu0
    %v235 = vadd.f32 0.0, %v234
    %236 = vmatmul.f32.gmra.mxu0 %v193
    %v237 = vpop.f32.mrf.mxu0
    %v238 = vadd.f32 0.0, %v237
    %239 = vdwg.mxu0
    %v240 = vxor.u32 %v217, 2147483648
    %v241 = vxor.u32 %v220, 2147483648
    %v242 = vxor.u32 %v223, 2147483648
    %v243 = vxor.u32 %v226, 2147483648
    %v244 = vxor.u32 %v229, 2147483648
    %v245 = vxor.u32 %v232, 2147483648
    %v246 = vxor.u32 %v235, 2147483648
    %v247 = vxor.u32 %v238, 2147483648
    %v248 = vmul.f32 %v240, 1.442695
    %v249 = vpow.pop %v248
    %v250 = vmul.f32 %v241, 1.442695
    %v251 = vpow.pop %v250
    %v252 = vmul.f32 %v242, 1.442695
    %v253 = vpow.pop %v252
    %v254 = vmul.f32 %v243, 1.442695
    %v255 = vpow.pop %v254
    %v256 = vmul.f32 %v244, 1.442695
    %v257 = vpow.pop %v256
    %v258 = vmul.f32 %v245, 1.442695
    %v259 = vpow.pop %v258
    %v260 = vmul.f32 %v246, 1.442695
    %v261 = vpow.pop %v260
    %v262 = vmul.f32 %v247, 1.442695
    %v263 = vpow.pop %v262
    %v264 = vadd.f32 %v249, 1.0
    %v265 = vadd.f32 %v251, 1.0
    %v266 = vadd.f32 %v253, 1.0
    %v267 = vadd.f32 %v255, 1.0
    %v268 = vadd.f32 %v257, 1.0
    %v269 = vadd.f32 %v259, 1.0
    %v270 = vadd.f32 %v261, 1.0
    %v271 = vadd.f32 %v263, 1.0
    %v272 = vrcp.pop %v264
    %v273 = vmul.f32 %v264, %v272
    %v274 = vsub.f32 1.0, %v273
    %v275 = vmul.f32 %v272, %v274
    %v276 = vadd.f32 %v272, %v275
    %vm277 = vweird.f32 %v264
    %vm278 = vweird.f32 %v272
    %vm279 = vmor %vm277, %vm278
    %v280 = vsel %vm279, %v272, %v276
    %v281 = vand.u32 2147483647, %v264
    %vm282 = vcmp.eq.f32.partialorder %v281, 8.507059e+37
    %v283 = vand.u32 %v264, 2147483648
    %v284 = vor.u32 1.1754944e-38, %v283
    %v285 = vsel %vm282, %v284, %v280
    %v286 = vmul.f32 1.0, %v285
    %v287 = vrcp.pop %v265
    %v288 = vmul.f32 %v265, %v287
    %v289 = vsub.f32 1.0, %v288
    %v290 = vmul.f32 %v287, %v289
    %v291 = vadd.f32 %v287, %v290
    %vm292 = vweird.f32 %v265
    %vm293 = vweird.f32 %v287
    %vm294 = vmor %vm292, %vm293
    %v295 = vsel %vm294, %v287, %v291
    %v296 = vand.u32 2147483647, %v265
    %vm297 = vcmp.eq.f32.partialorder %v296, 8.507059e+37
    %v298 = vand.u32 %v265, 2147483648
    %v299 = vor.u32 1.1754944e-38, %v298
    %v300 = vsel %vm297, %v299, %v295
    %v301 = vmul.f32 1.0, %v300
    %v302 = vrcp.pop %v266
    %v303 = vmul.f32 %v266, %v302
    %v304 = vsub.f32 1.0, %v303
    %v305 = vmul.f32 %v302, %v304
    %v306 = vadd.f32 %v302, %v305
    %vm307 = vweird.f32 %v266
    %vm308 = vweird.f32 %v302
    %vm309 = vmor %vm307, %vm308
    %v310 = vsel %vm309, %v302, %v306
    %v311 = vand.u32 2147483647, %v266
    %vm312 = vcmp.eq.f32.partialorder %v311, 8.507059e+37
    %v313 = vand.u32 %v266, 2147483648
    %v314 = vor.u32 1.1754944e-38, %v313
    %v315 = vsel %vm312, %v314, %v310
    %v316 = vmul.f32 1.0, %v315
    %v317 = vrcp.pop %v267
    %v318 = vmul.f32 %v267, %v317
    %v319 = vsub.f32 1.0, %v318
    %v320 = vmul.f32 %v317, %v319
    %v321 = vadd.f32 %v317, %v320
    %vm322 = vweird.f32 %v267
    %vm323 = vweird.f32 %v317
    %vm324 = vmor %vm322, %vm323
    %v325 = vsel %vm324, %v317, %v321
    %v326 = vand.u32 2147483647, %v267
    %vm327 = vcmp.eq.f32.partialorder %v326, 8.507059e+37
    %v328 = vand.u32 %v267, 2147483648
    %v329 = vor.u32 1.1754944e-38, %v328
    %v330 = vsel %vm327, %v329, %v325
    %v331 = vmul.f32 1.0, %v330
    %v332 = vrcp.pop %v268
    %v333 = vmul.f32 %v268, %v332
    %v334 = vsub.f32 1.0, %v333
    %v335 = vmul.f32 %v332, %v334
    %v336 = vadd.f32 %v332, %v335
    %vm337 = vweird.f32 %v268
    %vm338 = vweird.f32 %v332
    %vm339 = vmor %vm337, %vm338
    %v340 = vsel %vm339, %v332, %v336
    %v341 = vand.u32 2147483647, %v268
    %vm342 = vcmp.eq.f32.partialorder %v341, 8.507059e+37
    %v343 = vand.u32 %v268, 2147483648
    %v344 = vor.u32 1.1754944e-38, %v343
    %v345 = vsel %vm342, %v344, %v340
    %v346 = vmul.f32 1.0, %v345
    %v347 = vrcp.pop %v269
    %v348 = vmul.f32 %v269, %v347
    %v349 = vsub.f32 1.0, %v348
    %v350 = vmul.f32 %v347, %v349
    %v351 = vadd.f32 %v347, %v350
    %vm352 = vweird.f32 %v269
    %vm353 = vweird.f32 %v347
    %vm354 = vmor %vm352, %vm353
    %v355 = vsel %vm354, %v347, %v351
    %v356 = vand.u32 2147483647, %v269
    %vm357 = vcmp.eq.f32.partialorder %v356, 8.507059e+37
    %v358 = vand.u32 %v269, 2147483648
    %v359 = vor.u32 1.1754944e-38, %v358
    %v360 = vsel %vm357, %v359, %v355
    %v361 = vmul.f32 1.0, %v360
    %v362 = vrcp.pop %v270
    %v363 = vmul.f32 %v270, %v362
    %v364 = vsub.f32 1.0, %v363
    %v365 = vmul.f32 %v362, %v364
    %v366 = vadd.f32 %v362, %v365
    %vm367 = vweird.f32 %v270
    %vm368 = vweird.f32 %v362
    %vm369 = vmor %vm367, %vm368
    %v370 = vsel %vm369, %v362, %v366
    %v371 = vand.u32 2147483647, %v270
    %vm372 = vcmp.eq.f32.partialorder %v371, 8.507059e+37
    %v373 = vand.u32 %v270, 2147483648
    %v374 = vor.u32 1.1754944e-38, %v373
    %v375 = vsel %vm372, %v374, %v370
    %v376 = vmul.f32 1.0, %v375
    %v377 = vrcp.pop %v271
    %v378 = vmul.f32 %v271, %v377
    %v379 = vsub.f32 1.0, %v378
    %v380 = vmul.f32 %v377, %v379
    %v381 = vadd.f32 %v377, %v380
    %vm382 = vweird.f32 %v271
    %vm383 = vweird.f32 %v377
    %vm384 = vmor %vm382, %vm383
    %v385 = vsel %vm384, %v377, %v381
    %v386 = vand.u32 2147483647, %v271
    %vm387 = vcmp.eq.f32.partialorder %v386, 8.507059e+37
    %v388 = vand.u32 %v271, 2147483648
    %v389 = vor.u32 1.1754944e-38, %v388
    %v390 = vsel %vm387, %v389, %v385
    %v391 = vmul.f32 1.0, %v390
    %v392 = vld [vmem:[%s3 + $0x20] sm:$0x1]
    %v393 = vperm.slane %v392, 0
    %v394 = vmul.f32 %v286, %v393
    %v395 = vmul.f32 %v301, %v393
    %v396 = vmul.f32 %v316, %v393
    %v397 = vmul.f32 %v331, %v393
    %v398 = vmul.f32 %v346, %v393
    %v399 = vmul.f32 %v361, %v393
    %v400 = vmul.f32 %v376, %v393
    %v401 = vmul.f32 %v391, %v393
    %vm402 = vcmask 326656
    %v403 = vsel %vm402, %v394, 0.0
    %404 = vadd.xlane.f32.xlu0 %v403
    %v405 = vpop.xlane.xlu0 %404
    %v406 = vsel %vm402, %v395, 0.0
    %407 = vadd.xlane.f32.xlu0 %v406
    %v408 = vpop.xlane.xlu0 %407
    %v409 = vsel %vm402, %v396, 0.0
    %410 = vadd.xlane.f32.xlu0 %v409
    %v411 = vpop.xlane.xlu0 %410
    %v412 = vsel %vm402, %v397, 0.0
    %413 = vadd.xlane.f32.xlu0 %v412
    %v414 = vpop.xlane.xlu0 %413
    %v415 = vsel %vm402, %v398, 0.0
    %416 = vadd.xlane.f32.xlu0 %v415
    %v417 = vpop.xlane.xlu0 %416
    %v418 = vsel %vm402, %v399, 0.0
    %419 = vadd.xlane.f32.xlu0 %v418
    %v420 = vpop.xlane.xlu0 %419
    %v421 = vsel %vm402, %v400, 0.0
    %422 = vadd.xlane.f32.xlu0 %v421
    %v423 = vpop.xlane.xlu0 %422
    %v424 = vsel %vm402, %v401, 0.0
    %425 = vadd.xlane.f32.xlu0 %v424
    %v426 = vpop.xlane.xlu0 %425
    %v427 = vld [vmem:[%s2] sm:$0xff]
    %v429 = vperm.slane %v427, 0
    %v430 = vlaneseq
    %v431 = vshrl.u32 %v430, 7
    %433 = vset.pattern.permute.xlu0 %v431
    %434 = vperm.xlu0 %433, %v429
    %v435 = vpop.permute.xlu0 %434
    %v436 = vperm.slane %v427, 1
    %v437 = vlaneseq
    %v438 = vshrl.u32 %v437, 7
    %440 = vset.pattern.permute.xlu0 %v438
    %441 = vperm.xlu0 %440, %v436
    %v442 = vpop.permute.xlu0 %441
    %v443 = vperm.slane %v427, 2
    %v444 = vlaneseq
    %v445 = vshrl.u32 %v444, 7
    %447 = vset.pattern.permute.xlu0 %v445
    %448 = vperm.xlu0 %447, %v443
    %v449 = vpop.permute.xlu0 %448
    %v450 = vperm.slane %v427, 3
    %v451 = vlaneseq
    %v452 = vshrl.u32 %v451, 7
    %454 = vset.pattern.permute.xlu0 %v452
    %455 = vperm.xlu0 %454, %v450
    %v456 = vpop.permute.xlu0 %455
    %v457 = vperm.slane %v427, 4
    %v458 = vlaneseq
    %v459 = vshrl.u32 %v458, 7
    %461 = vset.pattern.permute.xlu0 %v459
    %462 = vperm.xlu0 %461, %v457
    %v463 = vpop.permute.xlu0 %462
    %v464 = vperm.slane %v427, 5
    %v465 = vlaneseq
    %v466 = vshrl.u32 %v465, 7
    %468 = vset.pattern.permute.xlu0 %v466
    %469 = vperm.xlu0 %468, %v464
    %v470 = vpop.permute.xlu0 %469
    %v471 = vperm.slane %v427, 6
    %v472 = vlaneseq
    %v473 = vshrl.u32 %v472, 7
    %475 = vset.pattern.permute.xlu0 %v473
    %476 = vperm.xlu0 %475, %v471
    %v477 = vpop.permute.xlu0 %476
    %v478 = vperm.slane %v427, 7
    %v479 = vlaneseq
    %v480 = vshrl.u32 %v479, 7
    %482 = vset.pattern.permute.xlu0 %v480
    %483 = vperm.xlu0 %482, %v478
    %v484 = vpop.permute.xlu0 %483
    %v493 = vadd.f32 %v405, %v435
    %v494 = vadd.f32 %v408, %v442
    %v495 = vadd.f32 %v411, %v449
    %v496 = vadd.f32 %v414, %v456
    %v497 = vadd.f32 %v417, %v463
    %v498 = vadd.f32 %v420, %v470
    %v499 = vadd.f32 %v423, %v477
    %v500 = vadd.f32 %v426, %v484
    %509 = vset.pattern.permute.xlu0 0
    %510 = vperm.xlu0 %509, %v493
    %v511 = vpop.permute.xlu0 %510
    %512 = vset.pattern.permute.xlu0 0
    %513 = vperm.xlu0 %512, %v494
    %v514 = vpop.permute.xlu0 %513
    %515 = vset.pattern.permute.xlu0 0
    %516 = vperm.xlu0 %515, %v495
    %v517 = vpop.permute.xlu0 %516
    %518 = vset.pattern.permute.xlu0 0
    %519 = vperm.xlu0 %518, %v496
    %v520 = vpop.permute.xlu0 %519
    %521 = vset.pattern.permute.xlu0 0
    %522 = vperm.xlu0 %521, %v497
    %v523 = vpop.permute.xlu0 %522
    %524 = vset.pattern.permute.xlu0 0
    %525 = vperm.xlu0 %524, %v498
    %v526 = vpop.permute.xlu0 %525
    %527 = vset.pattern.permute.xlu0 0
    %528 = vperm.xlu0 %527, %v499
    %v529 = vpop.permute.xlu0 %528
    %530 = vset.pattern.permute.xlu0 0
    %531 = vperm.xlu0 %530, %v500
    %v532 = vpop.permute.xlu0 %531
    %v533 = vlaneseq
    %v534 = vand.u32 %v533, 127
    %v535 = vperm.slane %v511, %v534
    %v536 = vperm.slane %v514, %v534
    %v537 = vperm.slane %v517, %v534
    %v538 = vperm.slane %v520, %v534
    %v539 = vperm.slane %v523, %v534
    %v540 = vperm.slane %v526, %v534
    %v541 = vperm.slane %v529, %v534
    %v542 = vperm.slane %v532, %v534
    %vm543 = vcmask 1041409
    %v544 = vsel %vm543, %v536, %v535
    %vm545 = vcmask 1042434
    %v546 = vsel %vm545, %v537, %v544
    %vm547 = vcmask 1043459
    %v548 = vsel %vm547, %v538, %v546
    %vm549 = vcmask 1044484
    %v550 = vsel %vm549, %v539, %v548
    %vm551 = vcmask 1045509
    %v552 = vsel %vm551, %v540, %v550
    %vm553 = vcmask 1046534
    %v554 = vsel %vm553, %v541, %v552
    %vm555 = vcmask 1047559
    %v556 = vsel %vm555, %v542, %v554
    %v558 = vsel %vm139, %v556, -inf
    %559 = vmax.xlane.f32.xlu0 %v558
    %v560 = vpop.xlane.xlu0 %559
    %v562 = vperm.slane %v560, 0
    %v563 = vperm.slane %v560, 1
    %v564 = vperm.slane %v560, 2
    %v565 = vperm.slane %v560, 3
    %v566 = vperm.slane %v560, 4
    %v567 = vperm.slane %v560, 5
    %v568 = vperm.slane %v560, 6
    %v569 = vperm.slane %v560, 7
    %v578 = vsub.f32 %v493, %v562
    %v579 = vsub.f32 %v494, %v563
    %v580 = vsub.f32 %v495, %v564
    %v581 = vsub.f32 %v496, %v565
    %v582 = vsub.f32 %v497, %v566
    %v583 = vsub.f32 %v498, %v567
    %v584 = vsub.f32 %v499, %v568
    %v585 = vsub.f32 %v500, %v569
    %v586 = vmul.f32 %v578, 1.442695
    %v587 = vpow.pop %v586
    %v588 = vmul.f32 %v579, 1.442695
    %v589 = vpow.pop %v588
    %v590 = vmul.f32 %v580, 1.442695
    %v591 = vpow.pop %v590
    %v592 = vmul.f32 %v581, 1.442695
    %v593 = vpow.pop %v592
    %v594 = vmul.f32 %v582, 1.442695
    %v595 = vpow.pop %v594
    %v596 = vmul.f32 %v583, 1.442695
    %v597 = vpow.pop %v596
    %v598 = vmul.f32 %v584, 1.442695
    %v599 = vpow.pop %v598
    %v600 = vmul.f32 %v585, 1.442695
    %v601 = vpow.pop %v600
    %610 = vset.pattern.permute.xlu0 0
    %611 = vperm.xlu0 %610, %v587
    %v612 = vpop.permute.xlu0 %611
    %613 = vset.pattern.permute.xlu0 0
    %614 = vperm.xlu0 %613, %v589
    %v615 = vpop.permute.xlu0 %614
    %616 = vset.pattern.permute.xlu0 0
    %617 = vperm.xlu0 %616, %v591
    %v618 = vpop.permute.xlu0 %617
    %619 = vset.pattern.permute.xlu0 0
    %620 = vperm.xlu0 %619, %v593
    %v621 = vpop.permute.xlu0 %620
    %622 = vset.pattern.permute.xlu0 0
    %623 = vperm.xlu0 %622, %v595
    %v624 = vpop.permute.xlu0 %623
    %625 = vset.pattern.permute.xlu0 0
    %626 = vperm.xlu0 %625, %v597
    %v627 = vpop.permute.xlu0 %626
    %628 = vset.pattern.permute.xlu0 0
    %629 = vperm.xlu0 %628, %v599
    %v630 = vpop.permute.xlu0 %629
    %631 = vset.pattern.permute.xlu0 0
    %632 = vperm.xlu0 %631, %v601
    %v633 = vpop.permute.xlu0 %632
    %v634 = vperm.slane %v612, %v534
    %v635 = vperm.slane %v615, %v534
    %v636 = vperm.slane %v618, %v534
    %v637 = vperm.slane %v621, %v534
    %v638 = vperm.slane %v624, %v534
    %v639 = vperm.slane %v627, %v534
    %v640 = vperm.slane %v630, %v534
    %v641 = vperm.slane %v633, %v534
    %v642 = vsel %vm543, %v635, %v634
    %v643 = vsel %vm545, %v636, %v642
    %v644 = vsel %vm547, %v637, %v643
    %v645 = vsel %vm549, %v638, %v644
    %v646 = vsel %vm551, %v639, %v645
    %v647 = vsel %vm553, %v640, %v646
    %v648 = vsel %vm555, %v641, %v647
    %v650 = vsel %vm139, %v648, 0.0
    %651 = vadd.xlane.f32.xlu0 %v650
    %v652 = vpop.xlane.xlu0 %651
    %v654 = vperm.slane %v652, 0
    %v655 = vperm.slane %v652, 1
    %v656 = vperm.slane %v652, 2
    %v657 = vperm.slane %v652, 3
    %v658 = vperm.slane %v652, 4
    %v659 = vperm.slane %v652, 5
    %v660 = vperm.slane %v652, 6
    %v661 = vperm.slane %v652, 7
    %v670 = vrcp.pop %v654
    %v671 = vmul.f32 %v654, %v670
    %v672 = vsub.f32 1.0, %v671
    %v673 = vmul.f32 %v670, %v672
    %v674 = vadd.f32 %v670, %v673
    %vm675 = vweird.f32 %v654
    %vm676 = vweird.f32 %v670
    %vm677 = vmor %vm675, %vm676
    %v678 = vsel %vm677, %v670, %v674
    %v679 = vand.u32 2147483647, %v654
    %vm680 = vcmp.eq.f32.partialorder %v679, 8.507059e+37
    %v681 = vand.u32 %v654, 2147483648
    %v682 = vor.u32 1.1754944e-38, %v681
    %v683 = vsel %vm680, %v682, %v678
    %v684 = vmul.f32 %v587, %v683
    %v685 = vrcp.pop %v655
    %v686 = vmul.f32 %v655, %v685
    %v687 = vsub.f32 1.0, %v686
    %v688 = vmul.f32 %v685, %v687
    %v689 = vadd.f32 %v685, %v688
    %vm690 = vweird.f32 %v655
    %vm691 = vweird.f32 %v685
    %vm692 = vmor %vm690, %vm691
    %v693 = vsel %vm692, %v685, %v689
    %v694 = vand.u32 2147483647, %v655
    %vm695 = vcmp.eq.f32.partialorder %v694, 8.507059e+37
    %v696 = vand.u32 %v655, 2147483648
    %v697 = vor.u32 1.1754944e-38, %v696
    %v698 = vsel %vm695, %v697, %v693
    %v699 = vmul.f32 %v589, %v698
    %v700 = vrcp.pop %v656
    %v701 = vmul.f32 %v656, %v700
    %v702 = vsub.f32 1.0, %v701
    %v703 = vmul.f32 %v700, %v702
    %v704 = vadd.f32 %v700, %v703
    %vm705 = vweird.f32 %v656
    %vm706 = vweird.f32 %v700
    %vm707 = vmor %vm705, %vm706
    %v708 = vsel %vm707, %v700, %v704
    %v709 = vand.u32 2147483647, %v656
    %vm710 = vcmp.eq.f32.partialorder %v709, 8.507059e+37
    %v711 = vand.u32 %v656, 2147483648
    %v712 = vor.u32 1.1754944e-38, %v711
    %v713 = vsel %vm710, %v712, %v708
    %v714 = vmul.f32 %v591, %v713
    %v715 = vrcp.pop %v657
    %v716 = vmul.f32 %v657, %v715
    %v717 = vsub.f32 1.0, %v716
    %v718 = vmul.f32 %v715, %v717
    %v719 = vadd.f32 %v715, %v718
    %vm720 = vweird.f32 %v657
    %vm721 = vweird.f32 %v715
    %vm722 = vmor %vm720, %vm721
    %v723 = vsel %vm722, %v715, %v719
    %v724 = vand.u32 2147483647, %v657
    %vm725 = vcmp.eq.f32.partialorder %v724, 8.507059e+37
    %v726 = vand.u32 %v657, 2147483648
    %v727 = vor.u32 1.1754944e-38, %v726
    %v728 = vsel %vm725, %v727, %v723
    %v729 = vmul.f32 %v593, %v728
    %v730 = vrcp.pop %v658
    %v731 = vmul.f32 %v658, %v730
    %v732 = vsub.f32 1.0, %v731
    %v733 = vmul.f32 %v730, %v732
    %v734 = vadd.f32 %v730, %v733
    %vm735 = vweird.f32 %v658
    %vm736 = vweird.f32 %v730
    %vm737 = vmor %vm735, %vm736
    %v738 = vsel %vm737, %v730, %v734
    %v739 = vand.u32 2147483647, %v658
    %vm740 = vcmp.eq.f32.partialorder %v739, 8.507059e+37
    %v741 = vand.u32 %v658, 2147483648
    %v742 = vor.u32 1.1754944e-38, %v741
    %v743 = vsel %vm740, %v742, %v738
    %v744 = vmul.f32 %v595, %v743
    %v745 = vrcp.pop %v659
    %v746 = vmul.f32 %v659, %v745
    %v747 = vsub.f32 1.0, %v746
    %v748 = vmul.f32 %v745, %v747
    %v749 = vadd.f32 %v745, %v748
    %vm750 = vweird.f32 %v659
    %vm751 = vweird.f32 %v745
    %vm752 = vmor %vm750, %vm751
    %v753 = vsel %vm752, %v745, %v749
    %v754 = vand.u32 2147483647, %v659
    %vm755 = vcmp.eq.f32.partialorder %v754, 8.507059e+37
    %v756 = vand.u32 %v659, 2147483648
    %v757 = vor.u32 1.1754944e-38, %v756
    %v758 = vsel %vm755, %v757, %v753
    %v759 = vmul.f32 %v597, %v758
    %v760 = vrcp.pop %v660
    %v761 = vmul.f32 %v660, %v760
    %v762 = vsub.f32 1.0, %v761
    %v763 = vmul.f32 %v760, %v762
    %v764 = vadd.f32 %v760, %v763
    %vm765 = vweird.f32 %v660
    %vm766 = vweird.f32 %v760
    %vm767 = vmor %vm765, %vm766
    %v768 = vsel %vm767, %v760, %v764
    %v769 = vand.u32 2147483647, %v660
    %vm770 = vcmp.eq.f32.partialorder %v769, 8.507059e+37
    %v771 = vand.u32 %v660, 2147483648
    %v772 = vor.u32 1.1754944e-38, %v771
    %v773 = vsel %vm770, %v772, %v768
    %v774 = vmul.f32 %v599, %v773
    %v775 = vrcp.pop %v661
    %v776 = vmul.f32 %v661, %v775
    %v777 = vsub.f32 1.0, %v776
    %v778 = vmul.f32 %v775, %v777
    %v779 = vadd.f32 %v775, %v778
    %vm780 = vweird.f32 %v661
    %vm781 = vweird.f32 %v775
    %vm782 = vmor %vm780, %vm781
    %v783 = vsel %vm782, %v775, %v779
    %v784 = vand.u32 2147483647, %v661
    %vm785 = vcmp.eq.f32.partialorder %v784, 8.507059e+37
    %v786 = vand.u32 %v661, 2147483648
    %v787 = vor.u32 1.1754944e-38, %v786
    %v788 = vsel %vm785, %v787, %v783
    %v789 = vmul.f32 %v601, %v788
    %v790 = vld [vmem:[%s3 + $0x28] sm:$0x1]
    %v791 = vperm.slane %v790, 0
    %v792 = vmul.f32 %v35, %v791
    %v793 = vmul.f32 %v36, %v791
    %v794 = vmul.f32 %v37, %v791
    %v795 = vmul.f32 %v38, %v791
    %v796 = vmul.f32 %v39, %v791
    %v797 = vmul.f32 %v40, %v791
    %v798 = vmul.f32 %v41, %v791
    %v799 = vmul.f32 %v42, %v791
    %v800 = vsel %vm139, %v792, 0.0
    %801 = vadd.xlane.f32.xlu0 %v800
    %v802 = vpop.xlane.xlu0 %801
    %v803 = vsel %vm139, %v793, 0.0
    %804 = vadd.xlane.f32.xlu0 %v803
    %v805 = vpop.xlane.xlu0 %804
    %v806 = vsel %vm139, %v794, 0.0
    %807 = vadd.xlane.f32.xlu0 %v806
    %v808 = vpop.xlane.xlu0 %807
    %v809 = vsel %vm139, %v795, 0.0
    %810 = vadd.xlane.f32.xlu0 %v809
    %v811 = vpop.xlane.xlu0 %810
    %v812 = vsel %vm139, %v796, 0.0
    %813 = vadd.xlane.f32.xlu0 %v812
    %v814 = vpop.xlane.xlu0 %813
    %v815 = vsel %vm139, %v797, 0.0
    %816 = vadd.xlane.f32.xlu0 %v815
    %v817 = vpop.xlane.xlu0 %816
    %v818 = vsel %vm139, %v798, 0.0
    %819 = vadd.xlane.f32.xlu0 %v818
    %v820 = vpop.xlane.xlu0 %819
    %v821 = vsel %vm139, %v799, 0.0
    %822 = vadd.xlane.f32.xlu0 %v821
    %v823 = vpop.xlane.xlu0 %822
    %v824 = vmul.f32 %v684, %v802
    %v825 = vmul.f32 %v699, %v805
    %v826 = vmul.f32 %v714, %v808
    %v827 = vmul.f32 %v729, %v811
    %v828 = vmul.f32 %v744, %v814
    %v829 = vmul.f32 %v759, %v817
    %v830 = vmul.f32 %v774, %v820
    %v831 = vmul.f32 %v789, %v823
    %840 = vset.pattern.permute.xlu0 0
    %841 = vperm.xlu0 %840, %v824
    %v842 = vpop.permute.xlu0 %841
    %843 = vset.pattern.permute.xlu0 0
    %844 = vperm.xlu0 %843, %v825
    %v845 = vpop.permute.xlu0 %844
    %846 = vset.pattern.permute.xlu0 0
    %847 = vperm.xlu0 %846, %v826
    %v848 = vpop.permute.xlu0 %847
    %849 = vset.pattern.permute.xlu0 0
    %850 = vperm.xlu0 %849, %v827
    %v851 = vpop.permute.xlu0 %850
    %852 = vset.pattern.permute.xlu0 0
    %853 = vperm.xlu0 %852, %v828
    %v854 = vpop.permute.xlu0 %853
    %855 = vset.pattern.permute.xlu0 0
    %856 = vperm.xlu0 %855, %v829
    %v857 = vpop.permute.xlu0 %856
    %858 = vset.pattern.permute.xlu0 0
    %859 = vperm.xlu0 %858, %v830
    %v860 = vpop.permute.xlu0 %859
    %861 = vset.pattern.permute.xlu0 0
    %862 = vperm.xlu0 %861, %v831
    %v863 = vpop.permute.xlu0 %862
    %v864 = vperm.slane %v842, %v534
    %v865 = vperm.slane %v845, %v534
    %v866 = vperm.slane %v848, %v534
    %v867 = vperm.slane %v851, %v534
    %v868 = vperm.slane %v854, %v534
    %v869 = vperm.slane %v857, %v534
    %v870 = vperm.slane %v860, %v534
    %v871 = vperm.slane %v863, %v534
    %v872 = vsel %vm543, %v865, %v864
    %v873 = vsel %vm545, %v866, %v872
    %v874 = vsel %vm547, %v867, %v873
    %v875 = vsel %vm549, %v868, %v874
    %v876 = vsel %vm551, %v869, %v875
    %v877 = vsel %vm553, %v870, %v876
    %v878 = vsel %vm555, %v871, %v877
    %v880 = vsel %vm139, %v878, 0.0
    %881 = vadd.xlane.f32.xlu0 %v880
    %v882 = vpop.xlane.xlu0 %881
    %s883 = sld [smem:[#allocation2]]
    %v884 = vstv %s883
    %v885 = vmul.f32 %v34, %v884
    %v886 = vadd.f32 %v882, %v885
    %s887 = sld [smem:[#allocation2 + $0x1]]
    %v888 = vstv %s887
    %v889 = vadd.f32 %v886, %v888
    %v890 = vxor.u32 %v889, 2147483648
    %v891 = vmul.f32 %v890, 1.442695
    %v892 = vpow.pop %v891
    %v893 = vadd.f32 %v892, 1.0
    %v894 = vrcp.pop %v893
    %v895 = vmul.f32 %v893, %v894
    %v896 = vsub.f32 1.0, %v895
    %v897 = vmul.f32 %v894, %v896
    %v898 = vadd.f32 %v894, %v897
    %vm899 = vweird.f32 %v893
    %vm900 = vweird.f32 %v894
    %vm901 = vmor %vm899, %vm900
    %v902 = vsel %vm901, %v894, %v898
    %v903 = vand.u32 2147483647, %v893
    %vm904 = vcmp.eq.f32.partialorder %v903, 8.507059e+37
    %v905 = vand.u32 %v893, 2147483648
    %v906 = vor.u32 1.1754944e-38, %v905
    %v907 = vsel %vm904, %v906, %v902
    %v908 = vmul.f32 1.0, %v907
    %910 = vset.pattern.permute.xlu0 8
    %911 = vperm.xlu0 %910, %v908
    %v912 = vpop.permute.xlu0 %911
    %v913 = vperm.slane %v912, %v534
    %vm915 = vcmask 57344
    %916 = vst.msk [vmem:[#allocation5] sm:$0x1] %vm915, %v913
    // Predicated region
    $region26: #{tpu_custom_call.1} parent=1 // pred_check
      _
    $region27: #{tpu_custom_call.1} parent=1 // pred_check_branch
      %918 = sbr.rel (0) target = $region29
    $region28: #{tpu_custom_call.1} parent=1 // pred_region
      %920 = vsyncadd [#allocation3], 0
      %s922 = sshll.u32 [#allocation5], 4
      %s923 = int_to_ptr.vmem [resolvable:$true] %s922
      %s924 = sshll.u32 %s5, 4
      %s925 = int_to_ptr.hbm [resolvable:$true] %s924
      %927 = dma.vmem_to_hbm [thread:$0]  %s923, 16, %s925, [#allocation3]
    $region29: #{tpu_custom_call.1} parent=1 // pred_fallthru
      _
    // Predicated region
    $region30: #{tpu_custom_call.1} parent=1 // pred_check
      _
    $region31: #{tpu_custom_call.1} parent=1 // pred_check_branch
      %929 = sbr.rel (0) target = $region33
    $region32: #{tpu_custom_call.1} parent=1 // pred_region
      %931 = dma.done [#allocation3], 16
    $region33: #{tpu_custom_call.1} parent=1 // pred_fallthru
      _
    %932 = vsyncpa [#allocation3], 1
    %933 = vsyncpa [#allocation4], 1

</llo_original>
